<compile_context>
chip_gen: v7x
topology: tpu7x:2x2x1
jax: 0.10.0
libtpu: 0.0.40
codegen_flags: <defaults>
</compile_context>

<pallas_src>
import jax
import jax.numpy as jnp
from jax import lax
from jax.experimental import pallas as pl
from jax.experimental.pallas import tpu as pltpu


def _leaky(x, slope=0.01):
    return jnp.where(x > 0, x, slope * x)


def pconv_kernel(a_ref, w_ref, prm_ref, out_ref):
    # One lane-dense MXU matmul per tile, f32 accumulation:
    #   (3*4*Cn, Ktot) @ (Ktot, bm) -> (3*4*Cn, bm)
    r = jnp.dot(w_ref[...], a_ref[...], preferred_element_type=jnp.float32)
    # Wide epilogue: per-row shift (conv bias + BN folded on host) + LeakyReLU
    # over the whole (3*4*Cn, bm) slab, then a 3-way sublane-sliced sum of the
    # early / now / after branches.  One unmasked bf16 store.
    y = _leaky(r + prm_ref[:, 0:1])
    c = out_ref.shape[0]                      # 4*Cn (static)
    out_ref[...] = (y[0:c] + y[c:2 * c] + y[2 * c:3 * c]).astype(out_ref.dtype)


def _pick_bm(m2p, target):
    """Largest lane-aligned (multiple of 128) tile dividing m2p, <= target.

    m2p is already padded to a multiple of 128.  Caps at m2p//2 so there are
    always >= 2 grid steps when the problem allows it (dual-TC on v7x,
    software pipelining); single-step only when m2p == 128.
    """
    if m2p <= 128:
        return m2p
    cap = max(128, min(target, (m2p // 2) // 128 * 128))
    best = 128
    bm = 256
    while bm <= cap:
        if m2p % bm == 0:
            best = bm
        bm += 128
    return best


def pconv_forward(x0, x1, x2, params, *, bm_target=2048, compute_dtype=jnp.bfloat16):
    """x0: early input (N,Ce,2H,2W); x1: now input (N,Cn,H,W); x2: after input (N,Ca,H/2,W/2)."""
    N, Ce, H0, W0 = x0.shape
    _, Cn, H, W = x1.shape
    _, Ca, H2, W2 = x2.shape
    assert H0 == 2 * H and W0 == 2 * W and 2 * H2 == H and 2 * W2 == W

    M2 = N * H2 * W2
    Ke = Ce * 4
    K0, K1, K2 = 4 * Ke, 4 * Cn, Ca
    Ktot = K0 + K1 + K2
    Cout = 4 * Cn

    # Pad lane axis to a multiple of 128: unmasked wide stores, multi-step grid.
    M2p = pl.cdiv(M2, 128) * 128
    bm = _pick_bm(M2p, bm_target)

    # ---- glue: inputs -> one (Ktot, M2p) bf16 operand (rows = positions/channels) ----
    a0 = x0.reshape(N, Ce, H2, 2, 2, W2, 2, 2)          # n c h2 ph kh w2 pw kw
    a0 = a0.transpose(3, 6, 1, 4, 7, 0, 2, 5).reshape(K0, M2)
    a1 = x1.reshape(N, Cn, H2, 2, W2, 2)                # n c h2 ph w2 pw
    a1 = a1.transpose(3, 5, 1, 0, 2, 4).reshape(K1, M2)
    a2 = x2.transpose(1, 0, 2, 3).reshape(K2, M2)
    a_cat = jnp.concatenate([a0, a1, a2], axis=0).astype(compute_dtype)
    if M2p != M2:
        a_cat = jnp.pad(a_cat, ((0, 0), (0, M2p - M2)))

    # ---- glue: fold conv bias + BN (eval mode) into weights / shifts ----
    eps = 1e-5
    s0 = params['bn_early_gamma'] * lax.rsqrt(params['bn_early_var'] + eps)
    t0 = (params['early_b'] - params['bn_early_mean']) * s0 + params['bn_early_beta']
    s1 = params['bn_now_gamma'] * lax.rsqrt(params['bn_now_var'] + eps)
    t1 = (params['now_b'] - params['bn_now_mean']) * s1 + params['bn_now_beta']

    w0 = s0[:, None] * params['early_w'].reshape(Cn, Ke)          # (Cn, Ke)
    w1 = s1[:, None] * params['now_w'].reshape(Cn, Cn)            # (Cn, Cn)
    eye4 = jnp.eye(4, dtype=jnp.float32)
    w0bd = jnp.kron(eye4, w0)                                     # (4Cn, 4Ke)
    w1bd = jnp.kron(eye4, w1)                                     # (4Cn, 4Cn)
    # ConvTranspose2d(k=s=2): per output position p it is a 1x1 conv with
    # weight slice up_w[:, :, ph, pw]; stack the 4 slices on the row axis.
    w2c = params['up_w'].transpose(2, 3, 1, 0).reshape(Cout, Ca)  # (4Cn, Ca)

    # Single block-diagonal weight: rows [0:4Cn) early, [4Cn:8Cn) now, [8Cn:12Cn) after.
    wfull = jnp.zeros((3 * Cout, Ktot), jnp.float32)
    wfull = wfull.at[0 * Cout:1 * Cout, 0:K0].set(w0bd)
    wfull = wfull.at[1 * Cout:2 * Cout, K0:K0 + K1].set(w1bd)
    wfull = wfull.at[2 * Cout:3 * Cout, K0 + K1:Ktot].set(w2c)
    wfull = wfull.astype(compute_dtype)

    # Per-row shift block (kept f32): col 0 = branch shift tiled over positions.
    prm = jnp.zeros((3 * Cout, 8), jnp.float32)
    prm = prm.at[0 * Cout:1 * Cout, 0].set(jnp.tile(t0, 4))
    prm = prm.at[1 * Cout:2 * Cout, 0].set(jnp.tile(t1, 4))
    prm = prm.at[2 * Cout:3 * Cout, 0].set(jnp.tile(params['up_b'], 4))

    cost = pl.CostEstimate(
        flops=2 * 3 * Cout * Ktot * M2p,
        transcendentals=0,
        bytes_accessed=(Ktot + Cout) * M2p * 2 + 3 * Cout * Ktot * 2 + 3 * Cout * 8 * 4,
    )

    out = pl.pallas_call(
        pconv_kernel,
        out_shape=jax.ShapeDtypeStruct((Cout, M2p), jnp.bfloat16),
        grid_spec=pltpu.PrefetchScalarGridSpec(
            num_scalar_prefetch=0,
            grid=(M2p // bm,),
            in_specs=[
                pl.BlockSpec((Ktot, bm), lambda i: (0, i)),
                pl.BlockSpec((3 * Cout, Ktot), lambda i: (0, 0)),
                pl.BlockSpec((3 * Cout, 8), lambda i: (0, 0)),
            ],
            out_specs=pl.BlockSpec((Cout, bm), lambda i: (0, i)),
        ),
        compiler_params=pltpu.CompilerParams(
            dimension_semantics=("parallel",),
            # Let XLA fuse the transpose/concat/cast producers of the big
            # activation operand into the pallas_call input path.
            allow_input_fusion=[True, False, False],
        ),
        cost_estimate=cost,
    )(a_cat, wfull, prm)

    # ---- glue: back to NCHW ----
    # TODO(synk): keep the (4*Cn, M2) packed layout flowing to the consumer
    #             instead of un-shuffling back to NCHW here.
    out = out[:, :M2]
    y = out.reshape(2, 2, Cn, N, H2, W2).transpose(3, 2, 4, 0, 5, 1)
    return y.reshape(N, Cn, H, W).astype(jnp.float32)


def pconv_reference(x0, x1, x2, params):
    """Pure-JAX f32 reference matching the PyTorch forward (BN in eval mode)."""
    eps, slope = 1e-5, 0.01
    leaky = lambda v: jnp.where(v > 0, v, slope * v)

    def bn(v, g, b, m, var):
        s = g * lax.rsqrt(var + eps)
        return (v - m[None, :, None, None]) * s[None, :, None, None] + b[None, :, None, None]

    early = lax.conv_general_dilated(
        x0, params['early_w'], window_strides=(2, 2), padding='VALID',
        dimension_numbers=('NCHW', 'OIHW', 'NCHW')) + params['early_b'][None, :, None, None]
    early = leaky(bn(early, params['bn_early_gamma'], params['bn_early_beta'],
                     params['bn_early_mean'], params['bn_early_var']))

    now = lax.conv_general_dilated(
        x1, params['now_w'], window_strides=(1, 1), padding='VALID',
        dimension_numbers=('NCHW', 'OIHW', 'NCHW')) + params['now_b'][None, :, None, None]
    now = leaky(bn(now, params['bn_now_gamma'], params['bn_now_beta'],
                   params['bn_now_mean'], params['bn_now_var']))

    # ConvTranspose2d(k=s=2): each input pixel fills its own 2x2 output block.
    N, Ca, H2, W2 = x2.shape
    Cn = params['up_w'].shape[1]
    t = jnp.einsum('nchw,cokl->nohkwl', x2, params['up_w'])
    after = t.reshape(N, Cn, 2 * H2, 2 * W2) + params['up_b'][None, :, None, None]
    after = leaky(after)

    return early + now + after


if __name__ == "__main__":
    # now_channel=8, early_channel=4, after_channel=16, downsample=upsample=2
    N, Ce, Cn, Ca = 2, 4, 8, 16
    H = W = 16

    key = jax.random.PRNGKey(0)
    keys = jax.random.split(key, 8)
    x0 = jax.random.normal(keys[0], (N, Ce, 2 * H, 2 * W), jnp.float32)   # early
    x1 = jax.random.normal(keys[1], (N, Cn, H, W), jnp.float32)           # now
    x2 = jax.random.normal(keys[2], (N, Ca, H // 2, W // 2), jnp.float32) # after

    params = {
        'early_w': 0.1 * jax.random.normal(keys[3], (Cn, Ce, 2, 2), jnp.float32),
        'early_b': 0.1 * jax.random.normal(keys[4], (Cn,), jnp.float32),
        'now_w': 0.1 * jax.random.normal(keys[5], (Cn, Cn, 1, 1), jnp.float32),
        'now_b': 0.1 * jax.random.normal(keys[6], (Cn,), jnp.float32),
        'up_w': 0.1 * jax.random.normal(keys[7], (Ca, Cn, 2, 2), jnp.float32),
        'up_b': jnp.linspace(-0.1, 0.1, Cn).astype(jnp.float32),
        # BatchNorm2d params at PyTorch defaults (fresh module, eval mode).
        'bn_early_gamma': jnp.ones((Cn,), jnp.float32),
        'bn_early_beta': jnp.zeros((Cn,), jnp.float32),
        'bn_early_mean': jnp.zeros((Cn,), jnp.float32),
        'bn_early_var': jnp.ones((Cn,), jnp.float32),
        'bn_now_gamma': jnp.ones((Cn,), jnp.float32),
        'bn_now_beta': jnp.zeros((Cn,), jnp.float32),
        'bn_now_mean': jnp.zeros((Cn,), jnp.float32),
        'bn_now_var': jnp.ones((Cn,), jnp.float32),
    }

    fwd = jax.jit(pconv_forward)
    out = jax.block_until_ready(fwd(x0, x1, x2, params))
    ref = pconv_reference(x0, x1, x2, params)
    assert out.shape == (N, Cn, H, W)
    # bf16 matmul operands and bf16 output store (f32 accumulation / epilogue)
    # -> relaxed tolerance vs the pure-f32 reference.
    assert jnp.allclose(out, ref, atol=5e-2, rtol=5e-2), float(jnp.max(jnp.abs(out - ref)))
    print("KERNEL_OK")
</pallas_src>

<mosaic_0001>
module attributes {stable_mosaic.version = 11 : i64} {
  func.func @pconv_kernel(%arg0: i32, %arg1: memref<112x128xbf16, #tpu.memory_space<vmem>>, %arg2: memref<96x112xbf16, #tpu.memory_space<vmem>>, %arg3: memref<96x8xf32, #tpu.memory_space<vmem>>, %arg4: memref<32x128xbf16, #tpu.memory_space<vmem>>) attributes {dimension_semantics = [#tpu.dimension_semantics<parallel>], iteration_bounds = array<i64: 1>, scalar_prefetch = 0 : i64, scratch_operands = 0 : i64, tpu.core_type = #tpu.core_type<tc>, window_params = [{transform_indices = @transform_0, window_bounds = array<i64: 112, 128>}, {pipeline_mode = #tpu.pipeline_mode<synchronous>, transform_indices = @transform_1, window_bounds = array<i64: 96, 112>}, {pipeline_mode = #tpu.pipeline_mode<synchronous>, transform_indices = @transform_2, window_bounds = array<i64: 96, 8>}, {transform_indices = @transform_3, window_bounds = array<i64: 32, 128>}]} {
    %c0 = arith.constant 0 : index
    %c0_0 = arith.constant 0 : index
    %0 = vector.load %arg2[%c0, %c0_0] : memref<96x112xbf16, #tpu.memory_space<vmem>>, vector<96x112xbf16>
    %c0_1 = arith.constant 0 : index
    %c0_2 = arith.constant 0 : index
    %1 = vector.load %arg1[%c0_1, %c0_2] : memref<112x128xbf16, #tpu.memory_space<vmem>>, vector<112x128xbf16>
    %cst = arith.constant dense<0.000000e+00> : vector<96x128xf32>
    %2 = tpu.matmul %0, %1, %cst {dimension_numbers = #tpu.dot_dimension_numbers<[1], [0], [0], [1], [0, 0, 1, 1], [], []>} : vector<96x112xbf16>, vector<112x128xbf16>, vector<96x128xf32> -> vector<96x128xf32>
    %c0_3 = arith.constant 0 : index
    %c0_4 = arith.constant 0 : index
    %3 = vector.load %arg3[%c0_3, %c0_4] : memref<96x8xf32, #tpu.memory_space<vmem>>, vector<96x1xf32>
    %4 = vector.broadcast %3 : vector<96x1xf32> to vector<96x128xf32>
    %5 = arith.addf %2, %4 : vector<96x128xf32>
    %cst_5 = arith.constant 0.000000e+00 : f32
    %6 = vector.broadcast %cst_5 : f32 to vector<96x128xf32>
    %7 = arith.cmpf ogt, %5, %6 : vector<96x128xf32>
    %cst_6 = arith.constant 0.00999999977 : f32
    %8 = vector.broadcast %cst_6 : f32 to vector<96x128xf32>
    %9 = arith.mulf %8, %5 : vector<96x128xf32>
    %10 = arith.select %7, %5, %9 : vector<96x128xi1>, vector<96x128xf32>
    %11 = vector.extract_strided_slice %10 {offsets = [0, 0], sizes = [32, 128], strides = [1, 1]} : vector<96x128xf32> to vector<32x128xf32>
    %12 = vector.extract_strided_slice %10 {offsets = [32, 0], sizes = [32, 128], strides = [1, 1]} : vector<96x128xf32> to vector<32x128xf32>
    %13 = arith.addf %11, %12 : vector<32x128xf32>
    %14 = vector.extract_strided_slice %10 {offsets = [64, 0], sizes = [32, 128], strides = [1, 1]} : vector<96x128xf32> to vector<32x128xf32>
    %15 = arith.addf %13, %14 : vector<32x128xf32>
    %16 = arith.truncf %15 : vector<32x128xf32> to vector<32x128xbf16>
    %c0_7 = arith.constant 0 : index
    %c0_8 = arith.constant 0 : index
    %17 = vector.load %arg4[%c0_7, %c0_8] : memref<32x128xbf16, #tpu.memory_space<vmem>>, vector<32x128xbf16>
    tpu.vector_store %arg4[%c0_7, %c0_8], %16 {strides = array<i32>} : memref<32x128xbf16, #tpu.memory_space<vmem>>, vector<32x128xbf16>,
    return
  }
  func.func @transform_0(%arg0: i32) -> (i32, i32) {
    %c0_i32 = arith.constant 0 : i32
    %c0_i32_0 = arith.constant 0 : i32
    return %c0_i32, %arg0 : i32, i32
  }
  func.func @transform_1(%arg0: i32) -> (i32, i32) {
    %c0_i32 = arith.constant 0 : i32
    %c0_i32_0 = arith.constant 0 : i32
    %c0_i32_1 = arith.constant 0 : i32
    return %c0_i32, %c0_i32_0 : i32, i32
  }
  func.func @transform_2(%arg0: i32) -> (i32, i32) {
    %c0_i32 = arith.constant 0 : i32
    %c0_i32_0 = arith.constant 0 : i32
    %c0_i32_1 = arith.constant 0 : i32
    return %c0_i32, %c0_i32_0 : i32, i32
  }
  func.func @transform_3(%arg0: i32) -> (i32, i32) {
    %c0_i32 = arith.constant 0 : i32
    %c0_i32_0 = arith.constant 0 : i32
    return %c0_i32, %arg0 : i32, i32
  }
}

</mosaic_0001>

<llo_original>
// kernel: tile.18
$region0: #{tile.18}
  #allocation0 [shape = 's32[1]{0}', space=sflag, size = 0x4, scoped, tag = 'scoped memory for tile.18']
  %s0 = inlined_call_operand.vmem [shape: f32[8], index: 0, kind: input, shape index: {}]
  %s1 = inlined_call_operand.vmem [shape: f32[4,8], index: 1, kind: output, shape index: {}]
  // Predicated region
  $region2: #{tile.18} parent=0 // pred_check
    _
  $region3: #{tile.18} parent=0 // pred_check_branch
    %3 = sbr.rel (0) target = $region5
  $region4: #{tile.18} parent=0 // pred_region
    _
  $region5: #{tile.18} parent=0 // pred_fallthru
    _
  %v4 = vld [vmem:[%s0] ss:$0 sm:$0xff]
  %5 = vst [vmem:[%s1] sm:$0xf] %v4

// kernel: pconv_forward.2
$region0: #{pconv_forward.2}
  #allocation0 [shape = 'u32[]', space=smem, size = 0x4, offset = 0x4, fixed_abs, tag = 'smem constant byte address 0x4 - core index']
  #allocation1 [shape = 'u32[144,128]{1,0:T(1,128)}', space=vmem, size = 0x12000, scoped, tag = 'internal scratch']
  #allocation2 [shape = 'u32[2048]{0}', space=vmem, size = 0x2000, scoped, tag = 'scoped memory for pconv_forward.2']
  #allocation3 [shape = 'u32[2048]{0}', space=vmem, size = 0x2000, scoped, tag = 'scoped memory for pconv_forward.2']
  #allocation4 [shape = 'u32[2048]{0}', space=vmem, size = 0x2000, scoped, tag = 'scoped memory for pconv_forward.2']
  #allocation5 [shape = 'u32[2048]{0}', space=vmem, size = 0x2000, scoped, tag = 'scoped memory for pconv_forward.2']
  #allocation6 [shape = 'u32[2048]{0}', space=vmem, size = 0x2000, scoped, tag = 'scoped memory for pconv_forward.2']
  #allocation7 [shape = 'u32[2048]{0}', space=vmem, size = 0x2000, scoped, tag = 'scoped memory for pconv_forward.2']
  #allocation8 [shape = 'u32[2048]{0}', space=vmem, size = 0x2000, scoped, tag = 'scoped memory for pconv_forward.2']
  #allocation9 [shape = 'u32[2048]{0}', space=vmem, size = 0x2000, scoped, tag = 'scoped memory for pconv_forward.2']
  #allocation10 [shape = 'u32[2048]{0}', space=vmem, size = 0x2000, scoped, tag = 'scoped memory for pconv_forward.2']
  #allocation11 [shape = 'u32[2048]{0}', space=vmem, size = 0x2000, scoped, tag = 'scoped memory for pconv_forward.2']
  #allocation12 [shape = 'u32[2048]{0}', space=vmem, size = 0x2000, scoped, tag = 'scoped memory for pconv_forward.2']
  #allocation13 [shape = 'u32[2048]{0}', space=vmem, size = 0x2000, scoped, tag = 'scoped memory for pconv_forward.2']
  #allocation14 [shape = 'u32[2048]{0}', space=vmem, size = 0x2000, scoped, tag = 'scoped memory for pconv_forward.2']
  #allocation15 [shape = 'u32[2048]{0}', space=vmem, size = 0x2000, scoped, tag = 'scoped memory for pconv_forward.2']
  #allocation16 [shape = 'u32[2048]{0}', space=vmem, size = 0x2000, scoped, tag = 'scoped memory for pconv_forward.2']
  %s0 = inlined_call_operand.vmem [shape: bf16[96,112], index: 0, kind: input, shape index: {}]
  %s1 = inlined_call_operand.vmem [shape: f32[96,8], index: 1, kind: input, shape index: {}]
  %s2 = inlined_call_operand.vmem [shape: bf16[16,128], index: 2, kind: input, shape index: {}]
  %s3 = inlined_call_operand.<no memory space> [shape: bf16[], index: 3, kind: input, shape index: {}]
  %s4 = inlined_call_operand.vmem [shape: bf16[32,128], index: 4, kind: input, shape index: {}]
  %s5 = inlined_call_operand.vmem [shape: bf16[64,128], index: 5, kind: input, shape index: {}]
  %s6 = inlined_call_operand.vmem [shape: bf16[32,128], index: 6, kind: output, shape index: {}]
  %s7 = sld [smem:[#allocation0]]
  $region30: #{pconv_forward.2} parent=0
    _
  %s9 = ssub.s32 1, %s7
  %s10 = scalar_select 0, %s9, %s7
  %v11 = vstv %s3
  %v12 = vunpack.i.l.bf16 %v11
  %v14 = vunpack.i.h.bf16 %v11
  %v16 = vstv %s3
  %v17 = vunpack.i.l.bf16 %v16
  %v19 = vunpack.i.h.bf16 %v16
  %v21 = vstv %s3
  %v22 = vunpack.i.l.bf16 %v21
  %v24 = vunpack.i.h.bf16 %v21
  $region1: #{pconv_forward.2} parent=0
    #allocation17 [shape = 'u8[28672]{0}', space=vmem, size = 0x7000, dematerialized = true, scoped, tag = 'FusionAdapter Buffer %fusion.1 = bf16[112,128]{1,0:T(8,128)(2,1)} fusion(%param_2.3, %param_3.2, %param_4.2, %param_5.2), kind=kLoop, calls=%fused_computation.3.clone, metadata={op_name="jit(pconv_forward)/concatenate" stack_frame_id=14}']
    // Predicated region
    $region2: #{pconv_forward.2} parent=1 // pred_check
      _
    $region3: #{pconv_forward.2} parent=1 // pred_check_branch
      %27 = sbr.rel (0) target = $region5
    $region4: #{pconv_forward.2} parent=1 // pred_region
      %s28 = scalar_lea.vmem %s2, 4294967248
    $region5: #{pconv_forward.2} parent=1 // pred_fallthru
      _
    // Predicated region
    $region6: #{pconv_forward.2} parent=1 // pred_check
      _
    $region7: #{pconv_forward.2} parent=1 // pred_check_branch
      %30 = sbr.rel (0) target = $region9
    $region8: #{pconv_forward.2} parent=1 // pred_region
      %s31 = scalar_lea.vmem %s4, 4294967264
    $region9: #{pconv_forward.2} parent=1 // pred_fallthru
      _
    // Predicated region
    $region10: #{pconv_forward.2} parent=1 // pred_check
      _
    $region11: #{pconv_forward.2} parent=1 // pred_check_branch
      %33 = sbr.rel (0) target = $region13
    $region12: #{pconv_forward.2} parent=1 // pred_region
      _
    $region13: #{pconv_forward.2} parent=1 // pred_fallthru
      _
    // Predicated region
    $region14: #{pconv_forward.2} parent=1 // pred_check
      _
    $region15: #{pconv_forward.2} parent=1 // pred_check_branch
      %35 = sbr.rel (0) target = $region17
    $region16: #{pconv_forward.2} parent=1 // pred_region
      _
    $region17: #{pconv_forward.2} parent=1 // pred_fallthru
      _
    // Predicated region
    $region18: #{pconv_forward.2} parent=1 // pred_check
      _
    $region19: #{pconv_forward.2} parent=1 // pred_check_branch
      %37 = sbr.rel (0) target = $region21
    $region20: #{pconv_forward.2} parent=1 // pred_region
      _
    $region21: #{pconv_forward.2} parent=1 // pred_fallthru
      _
    %s38 = scalar_lea.vmem %s2, 4294967248
    %s39 = scalar_lea.vmem %s4, 4294967264
    %s40 = scalar_lea.vmem %s2, 4294967248
    %s41 = scalar_lea.vmem %s4, 4294967264
    %s43 = sand.u32 0, 85
    %s44 = sshrl.u32 %s43, 1
    %s45 = sor.u32 %s43, %s44
    %s46 = sand.u32 51, %s45
    %s47 = sshrl.u32 %s46, 2
    %s48 = sor.u32 %s46, %s47
    %s49 = sand.u32 15, %s48
    %v50 = vld [vmem:[%s40] sm:%s49]
    %v51 = vunpack.c.l.bf16 %v50
    %v52 = vunpack.c.h.bf16 %v50
    %s54 = sand.u32 0, 85
    %s55 = sshrl.u32 %s54, 1
    %s56 = sor.u32 %s54, %s55
    %s57 = sand.u32 51, %s56
    %s58 = sshrl.u32 %s57, 2
    %s59 = sor.u32 %s57, %s58
    %s60 = sand.u32 15, %s59
    %v61 = vld [vmem:[%s41] sm:%s60]
    %v62 = vunpack.c.l.bf16 %v61
    %v63 = vunpack.c.h.bf16 %v61
    %v64 = vld [vmem:[%s5] sm:$0xf]
    %v65 = vunpack.c.l.bf16 %v64
    %v66 = vunpack.c.h.bf16 %v64
    %67 = xla_tuple %v65, %v17
    %68 = xla_tuple %67
    %v69 = vmax.f32 %v65, %v17
    %70 = xla_tuple %v69
    %71 = xla_tuple %v69, %v12
    %72 = xla_tuple %71
    %v73 = vmax.f32 %v69, %v12
    %74 = xla_tuple %v73
    %v75 = vpack.c.bf16 0.0, %v73
    %77 = vst [vmem:[#allocation17] sm:$0xf] %v75
    %s78 = scalar_lea.vmem %s40, 4
    %s80 = sand.u32 0, 85
    %s81 = sshrl.u32 %s80, 1
    %s82 = sor.u32 %s80, %s81
    %s83 = sand.u32 51, %s82
    %s84 = sshrl.u32 %s83, 2
    %s85 = sor.u32 %s83, %s84
    %s86 = sand.u32 15, %s85
    %v87 = vld [vmem:[%s78] sm:%s86]
    %v88 = vunpack.c.l.bf16 %v87
    %v89 = vunpack.c.h.bf16 %v87
    %s90 = scalar_lea.vmem %s41, 4
    %s92 = sand.u32 0, 85
    %s93 = sshrl.u32 %s92, 1
    %s94 = sor.u32 %s92, %s93
    %s95 = sand.u32 51, %s94
    %s96 = sshrl.u32 %s95, 2
    %s97 = sor.u32 %s95, %s96
    %s98 = sand.u32 15, %s97
    %v99 = vld [vmem:[%s90] sm:%s98]
    %v100 = vunpack.c.l.bf16 %v99
    %v101 = vunpack.c.h.bf16 %v99
    %s102 = scalar_lea.vmem %s5, 4
    %v103 = vld [vmem:[%s102] sm:$0xf]
    %v104 = vunpack.c.l.bf16 %v103
    %v105 = vunpack.c.h.bf16 %v103
    %106 = xla_tuple %v104, %v17
    %107 = xla_tuple %106
    %v108 = vmax.f32 %v104, %v17
    %109 = xla_tuple %v108
    %110 = xla_tuple %v108, %v12
    %111 = xla_tuple %110
    %v112 = vmax.f32 %v108, %v12
    %113 = xla_tuple %v112
    %s114 = scalar_lea.vmem [#allocation17], 4
    %v115 = vpack.c.bf16 0.0, %v112
    %117 = vst [vmem:[%s114] sm:$0xf] %v115
    %s118 = scalar_lea.vmem %s40, 8
    %s120 = sand.u32 0, 85
    %s121 = sshrl.u32 %s120, 1
    %s122 = sor.u32 %s120, %s121
    %s123 = sand.u32 51, %s122
    %s124 = sshrl.u32 %s123, 2
    %s125 = sor.u32 %s123, %s124
    %s126 = sand.u32 15, %s125
    %v127 = vld [vmem:[%s118] sm:%s126]
    %v128 = vunpack.c.l.bf16 %v127
    %v129 = vunpack.c.h.bf16 %v127
    %s130 = scalar_lea.vmem %s41, 8
    %s132 = sand.u32 0, 85
    %s133 = sshrl.u32 %s132, 1
    %s134 = sor.u32 %s132, %s133
    %s135 = sand.u32 51, %s134
    %s136 = sshrl.u32 %s135, 2
    %s137 = sor.u32 %s135, %s136
    %s138 = sand.u32 15, %s137
    %v139 = vld [vmem:[%s130] sm:%s138]
    %v140 = vunpack.c.l.bf16 %v139
    %v141 = vunpack.c.h.bf16 %v139
    %s142 = scalar_lea.vmem %s5, 8
    %s144 = sor.u32 255, 127
    %s145 = sand.u32 %s144, 85
    %s146 = sshrl.u32 %s145, 1
    %s147 = sor.u32 %s145, %s146
    %s148 = sand.u32 51, %s147
    %s149 = sshrl.u32 %s148, 2
    %s150 = sor.u32 %s148, %s149
    %s151 = sand.u32 15, %s150
    %v152 = vld [vmem:[%s142] sm:%s151]
    %v153 = vunpack.c.l.bf16 %v152
    %v154 = vunpack.c.h.bf16 %v152
    %155 = xla_tuple %v153, %v17
    %156 = xla_tuple %155
    %v157 = vmax.f32 %v153, %v17
    %158 = xla_tuple %v157
    %159 = xla_tuple %v157, %v12
    %160 = xla_tuple %159
    %v161 = vmax.f32 %v157, %v12
    %162 = xla_tuple %v161
    %s163 = scalar_lea.vmem [#allocation17], 8
    %v164 = vpack.c.bf16 0.0, %v161
    %166 = vst [vmem:[%s163] sm:$0xf] %v164
    %s167 = scalar_lea.vmem %s40, 12
    %s169 = sand.u32 0, 85
    %s170 = sshrl.u32 %s169, 1
    %s171 = sor.u32 %s169, %s170
    %s172 = sand.u32 51, %s171
    %s173 = sshrl.u32 %s172, 2
    %s174 = sor.u32 %s172, %s173
    %s175 = sand.u32 15, %s174
    %v176 = vld [vmem:[%s167] sm:%s175]
    %v177 = vunpack.c.l.bf16 %v176
    %v178 = vunpack.c.h.bf16 %v176
    %s179 = scalar_lea.vmem %s41, 12
    %s181 = sand.u32 0, 85
    %s182 = sshrl.u32 %s181, 1
    %s183 = sor.u32 %s181, %s182
    %s184 = sand.u32 51, %s183
    %s185 = sshrl.u32 %s184, 2
    %s186 = sor.u32 %s184, %s185
    %s187 = sand.u32 15, %s186
    %v188 = vld [vmem:[%s179] sm:%s187]
    %v189 = vunpack.c.l.bf16 %v188
    %v190 = vunpack.c.h.bf16 %v188
    %s191 = scalar_lea.vmem %s5, 12
    %s193 = sor.u32 255, 127
    %s194 = sand.u32 %s193, 85
    %s195 = sshrl.u32 %s194, 1
    %s196 = sor.u32 %s194, %s195
    %s197 = sand.u32 51, %s196
    %s198 = sshrl.u32 %s197, 2
    %s199 = sor.u32 %s197, %s198
    %s200 = sand.u32 15, %s199
    %v201 = vld [vmem:[%s191] sm:%s200]
    %v202 = vunpack.c.l.bf16 %v201
    %v203 = vunpack.c.h.bf16 %v201
    %204 = xla_tuple %v202, %v17
    %205 = xla_tuple %204
    %v206 = vmax.f32 %v202, %v17
    %207 = xla_tuple %v206
    %208 = xla_tuple %v206, %v12
    %209 = xla_tuple %208
    %v210 = vmax.f32 %v206, %v12
    %211 = xla_tuple %v210
    %s212 = scalar_lea.vmem [#allocation17], 12
    %v213 = vpack.c.bf16 0.0, %v210
    %215 = vst [vmem:[%s212] sm:$0xf] %v213
    %s216 = scalar_lea.vmem %s40, 16
    %s218 = sand.u32 0, 85
    %s219 = sshrl.u32 %s218, 1
    %s220 = sor.u32 %s218, %s219
    %s221 = sand.u32 51, %s220
    %s222 = sshrl.u32 %s221, 2
    %s223 = sor.u32 %s221, %s222
    %s224 = sand.u32 15, %s223
    %v225 = vld [vmem:[%s216] sm:%s224]
    %v226 = vunpack.c.l.bf16 %v225
    %v227 = vunpack.c.h.bf16 %v225
    %s228 = scalar_lea.vmem %s41, 16
    %s230 = sand.u32 0, 85
    %s231 = sshrl.u32 %s230, 1
    %s232 = sor.u32 %s230, %s231
    %s233 = sand.u32 51, %s232
    %s234 = sshrl.u32 %s233, 2
    %s235 = sor.u32 %s233, %s234
    %s236 = sand.u32 15, %s235
    %v237 = vld [vmem:[%s228] sm:%s236]
    %v238 = vunpack.c.l.bf16 %v237
    %v239 = vunpack.c.h.bf16 %v237
    %s240 = scalar_lea.vmem %s5, 16
    %s242 = sor.u32 255, 127
    %s243 = sand.u32 %s242, 85
    %s244 = sshrl.u32 %s243, 1
    %s245 = sor.u32 %s243, %s244
    %s246 = sand.u32 51, %s245
    %s247 = sshrl.u32 %s246, 2
    %s248 = sor.u32 %s246, %s247
    %s249 = sand.u32 15, %s248
    %v250 = vld [vmem:[%s240] sm:%s249]
    %v251 = vunpack.c.l.bf16 %v250
    %v252 = vunpack.c.h.bf16 %v250
    %253 = xla_tuple %v251, %v17
    %254 = xla_tuple %253
    %v255 = vmax.f32 %v251, %v17
    %256 = xla_tuple %v255
    %257 = xla_tuple %v255, %v12
    %258 = xla_tuple %257
    %v259 = vmax.f32 %v255, %v12
    %260 = xla_tuple %v259
    %s261 = scalar_lea.vmem [#allocation17], 16
    %v262 = vpack.c.bf16 0.0, %v259
    %264 = vst [vmem:[%s261] sm:$0xf] %v262
    %s265 = scalar_lea.vmem %s40, 20
    %s267 = sand.u32 0, 85
    %s268 = sshrl.u32 %s267, 1
    %s269 = sor.u32 %s267, %s268
    %s270 = sand.u32 51, %s269
    %s271 = sshrl.u32 %s270, 2
    %s272 = sor.u32 %s270, %s271
    %s273 = sand.u32 15, %s272
    %v274 = vld [vmem:[%s265] sm:%s273]
    %v275 = vunpack.c.l.bf16 %v274
    %v276 = vunpack.c.h.bf16 %v274
    %s277 = scalar_lea.vmem %s41, 20
    %s279 = sand.u32 0, 85
    %s280 = sshrl.u32 %s279, 1
    %s281 = sor.u32 %s279, %s280
    %s282 = sand.u32 51, %s281
    %s283 = sshrl.u32 %s282, 2
    %s284 = sor.u32 %s282, %s283
    %s285 = sand.u32 15, %s284
    %v286 = vld [vmem:[%s277] sm:%s285]
    %v287 = vunpack.c.l.bf16 %v286
    %v288 = vunpack.c.h.bf16 %v286
    %s289 = scalar_lea.vmem %s5, 20
    %s291 = sor.u32 255, 127
    %s292 = sand.u32 %s291, 85
    %s293 = sshrl.u32 %s292, 1
    %s294 = sor.u32 %s292, %s293
    %s295 = sand.u32 51, %s294
    %s296 = sshrl.u32 %s295, 2
    %s297 = sor.u32 %s295, %s296
    %s298 = sand.u32 15, %s297
    %v299 = vld [vmem:[%s289] sm:%s298]
    %v300 = vunpack.c.l.bf16 %v299
    %v301 = vunpack.c.h.bf16 %v299
    %302 = xla_tuple %v300, %v17
    %303 = xla_tuple %302
    %v304 = vmax.f32 %v300, %v17
    %305 = xla_tuple %v304
    %306 = xla_tuple %v304, %v12
    %307 = xla_tuple %306
    %v308 = vmax.f32 %v304, %v12
    %309 = xla_tuple %v308
    %s310 = scalar_lea.vmem [#allocation17], 20
    %v311 = vpack.c.bf16 0.0, %v308
    %313 = vst [vmem:[%s310] sm:$0xf] %v311
    %s314 = scalar_lea.vmem %s40, 24
    %s316 = sand.u32 0, 85
    %s317 = sshrl.u32 %s316, 1
    %s318 = sor.u32 %s316, %s317
    %s319 = sand.u32 51, %s318
    %s320 = sshrl.u32 %s319, 2
    %s321 = sor.u32 %s319, %s320
    %s322 = sand.u32 15, %s321
    %v323 = vld [vmem:[%s314] sm:%s322]
    %v324 = vunpack.c.l.bf16 %v323
    %v325 = vunpack.c.h.bf16 %v323
    %s326 = scalar_lea.vmem %s41, 24
    %s328 = sand.u32 0, 85
    %s329 = sshrl.u32 %s328, 1
    %s330 = sor.u32 %s328, %s329
    %s331 = sand.u32 51, %s330
    %s332 = sshrl.u32 %s331, 2
    %s333 = sor.u32 %s331, %s332
    %s334 = sand.u32 15, %s333
    %v335 = vld [vmem:[%s326] sm:%s334]
    %v336 = vunpack.c.l.bf16 %v335
    %v337 = vunpack.c.h.bf16 %v335
    %s338 = scalar_lea.vmem %s5, 24
    %s340 = sor.u32 255, 127
    %s341 = sand.u32 %s340, 85
    %s342 = sshrl.u32 %s341, 1
    %s343 = sor.u32 %s341, %s342
    %s344 = sand.u32 51, %s343
    %s345 = sshrl.u32 %s344, 2
    %s346 = sor.u32 %s344, %s345
    %s347 = sand.u32 15, %s346
    %v348 = vld [vmem:[%s338] sm:%s347]
    %v349 = vunpack.c.l.bf16 %v348
    %v350 = vunpack.c.h.bf16 %v348
    %351 = xla_tuple %v349, %v17
    %352 = xla_tuple %351
    %v353 = vmax.f32 %v349, %v17
    %354 = xla_tuple %v353
    %355 = xla_tuple %v353, %v12
    %356 = xla_tuple %355
    %v357 = vmax.f32 %v353, %v12
    %358 = xla_tuple %v357
    %s359 = scalar_lea.vmem [#allocation17], 24
    %v360 = vpack.c.bf16 0.0, %v357
    %362 = vst [vmem:[%s359] sm:$0xf] %v360
    %s363 = scalar_lea.vmem %s40, 28
    %s365 = sand.u32 0, 85
    %s366 = sshrl.u32 %s365, 1
    %s367 = sor.u32 %s365, %s366
    %s368 = sand.u32 51, %s367
    %s369 = sshrl.u32 %s368, 2
    %s370 = sor.u32 %s368, %s369
    %s371 = sand.u32 15, %s370
    %v372 = vld [vmem:[%s363] sm:%s371]
    %v373 = vunpack.c.l.bf16 %v372
    %v374 = vunpack.c.h.bf16 %v372
    %s375 = scalar_lea.vmem %s41, 28
    %s377 = sand.u32 0, 85
    %s378 = sshrl.u32 %s377, 1
    %s379 = sor.u32 %s377, %s378
    %s380 = sand.u32 51, %s379
    %s381 = sshrl.u32 %s380, 2
    %s382 = sor.u32 %s380, %s381
    %s383 = sand.u32 15, %s382
    %v384 = vld [vmem:[%s375] sm:%s383]
    %v385 = vunpack.c.l.bf16 %v384
    %v386 = vunpack.c.h.bf16 %v384
    %s387 = scalar_lea.vmem %s5, 28
    %s389 = sor.u32 255, 127
    %s390 = sand.u32 %s389, 85
    %s391 = sshrl.u32 %s390, 1
    %s392 = sor.u32 %s390, %s391
    %s393 = sand.u32 51, %s392
    %s394 = sshrl.u32 %s393, 2
    %s395 = sor.u32 %s393, %s394
    %s396 = sand.u32 15, %s395
    %v397 = vld [vmem:[%s387] sm:%s396]
    %v398 = vunpack.c.l.bf16 %v397
    %v399 = vunpack.c.h.bf16 %v397
    %400 = xla_tuple %v398, %v17
    %401 = xla_tuple %400
    %v402 = vmax.f32 %v398, %v17
    %403 = xla_tuple %v402
    %404 = xla_tuple %v402, %v12
    %405 = xla_tuple %404
    %v406 = vmax.f32 %v402, %v12
    %407 = xla_tuple %v406
    %s408 = scalar_lea.vmem [#allocation17], 28
    %v409 = vpack.c.bf16 0.0, %v406
    %411 = vst [vmem:[%s408] sm:$0xf] %v409
    %s412 = scalar_lea.vmem %s40, 32
    %s414 = sand.u32 0, 85
    %s415 = sshrl.u32 %s414, 1
    %s416 = sor.u32 %s414, %s415
    %s417 = sand.u32 51, %s416
    %s418 = sshrl.u32 %s417, 2
    %s419 = sor.u32 %s417, %s418
    %s420 = sand.u32 15, %s419
    %v421 = vld [vmem:[%s412] sm:%s420]
    %v422 = vunpack.c.l.bf16 %v421
    %v423 = vunpack.c.h.bf16 %v421
    %s424 = scalar_lea.vmem %s41, 32
    %v425 = vld [vmem:[%s424] sm:$0xf]
    %v426 = vunpack.c.l.bf16 %v425
    %v427 = vunpack.c.h.bf16 %v425
    %428 = xla_tuple %v22, %v426
    %429 = xla_tuple %428
    %v430 = vmax.f32 %v22, %v426
    %431 = xla_tuple %v430
    %432 = xla_tuple %v430, %v12
    %433 = xla_tuple %432
    %v434 = vmax.f32 %v430, %v12
    %435 = xla_tuple %v434
    %s436 = scalar_lea.vmem [#allocation17], 32
    %v437 = vpack.c.bf16 0.0, %v434
    %439 = vst [vmem:[%s436] sm:$0xf] %v437
    %s440 = scalar_lea.vmem %s40, 36
    %s442 = sand.u32 0, 85
    %s443 = sshrl.u32 %s442, 1
    %s444 = sor.u32 %s442, %s443
    %s445 = sand.u32 51, %s444
    %s446 = sshrl.u32 %s445, 2
    %s447 = sor.u32 %s445, %s446
    %s448 = sand.u32 15, %s447
    %v449 = vld [vmem:[%s440] sm:%s448]
    %v450 = vunpack.c.l.bf16 %v449
    %v451 = vunpack.c.h.bf16 %v449
    %s452 = scalar_lea.vmem %s41, 36
    %v453 = vld [vmem:[%s452] sm:$0xf]
    %v454 = vunpack.c.l.bf16 %v453
    %v455 = vunpack.c.h.bf16 %v453
    %456 = xla_tuple %v22, %v454
    %457 = xla_tuple %456
    %v458 = vmax.f32 %v22, %v454
    %459 = xla_tuple %v458
    %460 = xla_tuple %v458, %v12
    %461 = xla_tuple %460
    %v462 = vmax.f32 %v458, %v12
    %463 = xla_tuple %v462
    %s464 = scalar_lea.vmem [#allocation17], 36
    %v465 = vpack.c.bf16 0.0, %v462
    %467 = vst [vmem:[%s464] sm:$0xf] %v465
    %s468 = scalar_lea.vmem %s40, 40
    %s470 = sand.u32 0, 85
    %s471 = sshrl.u32 %s470, 1
    %s472 = sor.u32 %s470, %s471
    %s473 = sand.u32 51, %s472
    %s474 = sshrl.u32 %s473, 2
    %s475 = sor.u32 %s473, %s474
    %s476 = sand.u32 15, %s475
    %v477 = vld [vmem:[%s468] sm:%s476]
    %v478 = vunpack.c.l.bf16 %v477
    %v479 = vunpack.c.h.bf16 %v477
    %s480 = scalar_lea.vmem %s41, 40
    %s482 = sor.u32 255, 127
    %s483 = sand.u32 %s482, 85
    %s484 = sshrl.u32 %s483, 1
    %s485 = sor.u32 %s483, %s484
    %s486 = sand.u32 51, %s485
    %s487 = sshrl.u32 %s486, 2
    %s488 = sor.u32 %s486, %s487
    %s489 = sand.u32 15, %s488
    %v490 = vld [vmem:[%s480] sm:%s489]
    %v491 = vunpack.c.l.bf16 %v490
    %v492 = vunpack.c.h.bf16 %v490
    %493 = xla_tuple %v22, %v491
    %494 = xla_tuple %493
    %v495 = vmax.f32 %v22, %v491
    %496 = xla_tuple %v495
    %497 = xla_tuple %v495, %v12
    %498 = xla_tuple %497
    %v499 = vmax.f32 %v495, %v12
    %500 = xla_tuple %v499
    %s501 = scalar_lea.vmem [#allocation17], 40
    %v502 = vpack.c.bf16 0.0, %v499
    %504 = vst [vmem:[%s501] sm:$0xf] %v502
    %s505 = scalar_lea.vmem %s40, 44
    %s507 = sand.u32 0, 85
    %s508 = sshrl.u32 %s507, 1
    %s509 = sor.u32 %s507, %s508
    %s510 = sand.u32 51, %s509
    %s511 = sshrl.u32 %s510, 2
    %s512 = sor.u32 %s510, %s511
    %s513 = sand.u32 15, %s512
    %v514 = vld [vmem:[%s505] sm:%s513]
    %v515 = vunpack.c.l.bf16 %v514
    %v516 = vunpack.c.h.bf16 %v514
    %s517 = scalar_lea.vmem %s41, 44
    %s519 = sor.u32 255, 127
    %s520 = sand.u32 %s519, 85
    %s521 = sshrl.u32 %s520, 1
    %s522 = sor.u32 %s520, %s521
    %s523 = sand.u32 51, %s522
    %s524 = sshrl.u32 %s523, 2
    %s525 = sor.u32 %s523, %s524
    %s526 = sand.u32 15, %s525
    %v527 = vld [vmem:[%s517] sm:%s526]
    %v528 = vunpack.c.l.bf16 %v527
    %v529 = vunpack.c.h.bf16 %v527
    %530 = xla_tuple %v22, %v528
    %531 = xla_tuple %530
    %v532 = vmax.f32 %v22, %v528
    %533 = xla_tuple %v532
    %534 = xla_tuple %v532, %v12
    %535 = xla_tuple %534
    %v536 = vmax.f32 %v532, %v12
    %537 = xla_tuple %v536
    %s538 = scalar_lea.vmem [#allocation17], 44
    %v539 = vpack.c.bf16 0.0, %v536
    %541 = vst [vmem:[%s538] sm:$0xf] %v539
    %s542 = scalar_lea.vmem %s40, 48
    %v543 = vld [vmem:[%s542] sm:$0xf]
    %v544 = vunpack.c.l.bf16 %v543
    %v545 = vunpack.c.h.bf16 %v543
    %546 = xla_tuple %v22, %v17
    %547 = xla_tuple %546
    %v548 = vmax.f32 %v22, %v17
    %549 = xla_tuple %v548
    %550 = xla_tuple %v548, %v544
    %551 = xla_tuple %550
    %v552 = vmax.f32 %v548, %v544
    %553 = xla_tuple %v552
    %s554 = scalar_lea.vmem [#allocation17], 48
    %v555 = vpack.c.bf16 0.0, %v552
    %557 = vst [vmem:[%s554] sm:$0xf] %v555
    %s558 = scalar_lea.vmem %s40, 52
    %v559 = vld [vmem:[%s558] sm:$0xf]
    %v560 = vunpack.c.l.bf16 %v559
    %v561 = vunpack.c.h.bf16 %v559
    %562 = xla_tuple %v22, %v17
    %563 = xla_tuple %562
    %v564 = vmax.f32 %v22, %v17
    %565 = xla_tuple %v564
    %566 = xla_tuple %v564, %v560
    %567 = xla_tuple %566
    %v568 = vmax.f32 %v564, %v560
    %569 = xla_tuple %v568
    %s570 = scalar_lea.vmem [#allocation17], 52
    %v571 = vpack.c.bf16 0.0, %v568
    %573 = vst [vmem:[%s570] sm:$0xf] %v571
    %v575 = vld [vmem:[%s0] sm:$0xf]
    %v576 = vld [vmem:[%s0 + $0x4] sm:$0xf]
    %v577 = vld [vmem:[%s0 + $0x8] sm:$0xf]
    %v578 = vld [vmem:[%s0 + $0xc] sm:$0xf]
    %v579 = vld [vmem:[%s0 + $0x10] sm:$0xf]
    %v580 = vld [vmem:[%s0 + $0x14] sm:$0xf]
    %v581 = vld [vmem:[%s0 + $0x18] sm:$0xf]
    %v582 = vld [vmem:[%s0 + $0x1c] sm:$0xf]
    %v583 = vld [vmem:[%s0 + $0x20] sm:$0xf]
    %v584 = vld [vmem:[%s0 + $0x24] sm:$0xf]
    %v585 = vld [vmem:[%s0 + $0x28] sm:$0xf]
    %v586 = vld [vmem:[%s0 + $0x2c] sm:$0xf]
    %v587 = vld [vmem:[#allocation17] sm:$0xf]
    %v588 = vld [vmem:[#allocation17 + $0x4] sm:$0xf]
    %v589 = vld [vmem:[#allocation17 + $0x8] sm:$0xf]
    %v590 = vld [vmem:[#allocation17 + $0xc] sm:$0xf]
    %v591 = vld [vmem:[#allocation17 + $0x10] sm:$0xf]
    %v592 = vld [vmem:[#allocation17 + $0x14] sm:$0xf]
    %v593 = vld [vmem:[#allocation17 + $0x18] sm:$0xf]
    %v594 = vld [vmem:[#allocation17 + $0x1c] sm:$0xf]
    %v595 = vld [vmem:[#allocation17 + $0x20] sm:$0xf]
    %v596 = vld [vmem:[#allocation17 + $0x24] sm:$0xf]
    %v597 = vld [vmem:[#allocation17 + $0x28] sm:$0xf]
    %v598 = vld [vmem:[#allocation17 + $0x2c] sm:$0xf]
    %v599 = vld [vmem:[#allocation17 + $0x30] sm:$0xf]
    %v600 = vld [vmem:[#allocation17 + $0x34] sm:$0xf]
    %v601 = vld [vmem:[%s1] sm:$0xff]
    %v602 = vld [vmem:[%s1 + $0x8] sm:$0xff]
    %v603 = vld [vmem:[%s1 + $0x10] sm:$0xff]
    %v604 = vld [vmem:[%s1 + $0x18] sm:$0xff]
    %v605 = vld [vmem:[%s1 + $0x20] sm:$0xff]
    %v606 = vld [vmem:[%s1 + $0x28] sm:$0xff]
    %v607 = vld [vmem:[%s1 + $0x30] sm:$0xff]
    %v608 = vld [vmem:[%s1 + $0x38] sm:$0xff]
    %v609 = vld [vmem:[%s1 + $0x40] sm:$0xff]
    %v610 = vld [vmem:[%s1 + $0x48] sm:$0xff]
    %v611 = vld [vmem:[%s1 + $0x50] sm:$0xff]
    %v612 = vld [vmem:[%s1 + $0x58] sm:$0xff]
    %614 = vset.pattern.permute.xlu0 0
    %615 = vperm.xlu0 %614, %v601
    %v616 = vpop.permute.xlu0 %615
    %619 = vset.pattern.permute.xlu0 0
    %620 = vperm.xlu0 %619, %v602
    %v621 = vpop.permute.xlu0 %620
    %624 = vset.pattern.permute.xlu0 0
    %625 = vperm.xlu0 %624, %v603
    %v626 = vpop.permute.xlu0 %625
    %629 = vset.pattern.permute.xlu0 0
    %630 = vperm.xlu0 %629, %v604
    %v631 = vpop.permute.xlu0 %630
    %634 = vset.pattern.permute.xlu0 0
    %635 = vperm.xlu0 %634, %v605
    %v636 = vpop.permute.xlu0 %635
    %639 = vset.pattern.permute.xlu0 0
    %640 = vperm.xlu0 %639, %v606
    %v641 = vpop.permute.xlu0 %640
    %644 = vset.pattern.permute.xlu0 0
    %645 = vperm.xlu0 %644, %v607
    %v646 = vpop.permute.xlu0 %645
    %649 = vset.pattern.permute.xlu0 0
    %650 = vperm.xlu0 %649, %v608
    %v651 = vpop.permute.xlu0 %650
    %654 = vset.pattern.permute.xlu0 0
    %655 = vperm.xlu0 %654, %v609
    %v656 = vpop.permute.xlu0 %655
    %659 = vset.pattern.permute.xlu0 0
    %660 = vperm.xlu0 %659, %v610
    %v661 = vpop.permute.xlu0 %660
    %664 = vset.pattern.permute.xlu0 0
    %665 = vperm.xlu0 %664, %v611
    %v666 = vpop.permute.xlu0 %665
    %669 = vset.pattern.permute.xlu0 0
    %670 = vperm.xlu0 %669, %v612
    %v671 = vpop.permute.xlu0 %670
    %v685 = vunpack.c.l.b16 %v575
    %v686 = vunpack.c.l.b16 %v576
    %v687 = vunpack.c.l.b16 %v577
    %v688 = vunpack.c.l.b16 %v578
    %v689 = vunpack.c.l.b16 %v579
    %v690 = vunpack.c.l.b16 %v580
    %v691 = vunpack.c.l.b16 %v581
    %v692 = vunpack.c.l.b16 %v582
    %v693 = vunpack.c.l.b16 %v583
    %v694 = vunpack.c.l.b16 %v584
    %v695 = vunpack.c.l.b16 %v585
    %v696 = vunpack.c.l.b16 %v586
    %v697 = vpack.c.b16 %v686, %v685
    %v698 = vpack.c.b16 %v688, %v687
    %v699 = vpack.c.b16 %v690, %v689
    %v700 = vpack.c.b16 %v692, %v691
    %v701 = vpack.c.b16 %v694, %v693
    %v702 = vpack.c.b16 %v696, %v695
    %v717 = vunpack.c.l.b16 %v587
    %v718 = vunpack.c.l.b16 %v588
    %v719 = vunpack.c.l.b16 %v589
    %v720 = vunpack.c.l.b16 %v590
    %v721 = vunpack.c.l.b16 %v591
    %v722 = vunpack.c.l.b16 %v592
    %v723 = vunpack.c.l.b16 %v593
    %v724 = vunpack.c.l.b16 %v594
    %v725 = vunpack.c.l.b16 %v595
    %v726 = vunpack.c.l.b16 %v596
    %v727 = vunpack.c.l.b16 %v597
    %v728 = vunpack.c.l.b16 %v598
    %v729 = vunpack.c.l.b16 %v599
    %v730 = vunpack.c.l.b16 %v600
    %v731 = vpack.c.b16 %v718, %v717
    %v732 = vpack.c.b16 %v720, %v719
    %v733 = vpack.c.b16 %v722, %v721
    %v734 = vpack.c.b16 %v724, %v723
    %v735 = vpack.c.b16 %v726, %v725
    %v736 = vpack.c.b16 %v728, %v727
    %v737 = vpack.c.b16 %v730, %v729
    %vm745 = vcmask 916480
    %v747 = vsel %vm745, %v697, 0
    %v750 = vsel %vm745, %v698, 0
    %v753 = vsel %vm745, %v699, 0
    %v756 = vsel %vm745, %v700, 0
    %v759 = vsel %vm745, %v701, 0
    %v762 = vsel %vm745, %v702, 0
    %764 = vmatprep.subr.bf16.mxu0 0
    %765 = vmatpush1.bf16.msra.mxu0 %v731
    %766 = vmatprep.subr.bf16.mxu0 0
    %767 = vmatpush1.bf16.msra.mxu0 %v732
    %768 = vmatprep.subr.bf16.mxu0 0
    %769 = vmatpush1.bf16.msra.mxu0 %v733
    %770 = vmatprep.subr.bf16.mxu0 0
    %771 = vmatpush1.bf16.msra.mxu0 %v734
    %772 = vmatprep.subr.bf16.mxu0 0
    %773 = vmatpush1.bf16.msra.mxu0 %v735
    %774 = vmatprep.subr.bf16.mxu0 0
    %775 = vmatpush1.bf16.msra.mxu0 %v736
    %776 = vmatprep.subr.bf16.mxu0 0
    %777 = vmatpush1.bf16.msra.mxu0 %v737
    %778 = vmatprep.subr.bf16.mxu0 0
    %779 = vmatpush1.bf16.msra.mxu0 0
    %780 = vmatprep.subr.bf16.mxu0 0
    %781 = vmatpush1.bf16.msra.mxu0 0
    %782 = vmatprep.subr.bf16.mxu0 0
    %783 = vmatpush1.bf16.msra.mxu0 0
    %784 = vmatprep.subr.bf16.mxu0 0
    %785 = vmatpush1.bf16.msra.mxu0 0
    %786 = vmatprep.subr.bf16.mxu0 0
    %787 = vmatpush1.bf16.msra.mxu0 0
    %788 = vmatprep.subr.bf16.mxu0 0
    %789 = vmatpush1.bf16.msra.mxu0 0
    %790 = vmatprep.subr.bf16.mxu0 0
    %791 = vmatpush1.bf16.msra.mxu0 0
    %792 = vmatprep.subr.bf16.mxu0 0
    %793 = vmatpush1.bf16.msra.mxu0 0
    %794 = vmatprep.subr.bf16.mxu0 0
    %795 = vmatpush1.bf16.msra.mxu0 0
    %796 = vmatprep.mubr.bf16.mxu0 0
    %797 = vmatmul.mubr.bf16.gmra.mrb[0].mxu0 %v747
    %v798 = vpop.f32.mrb[0].mxu0
    %v799 = vadd.f32 %v616, %v798
    %v800 = vpop.f32.mrb[0].mxu0
    %v801 = vpop.f32.mrb[0].mxu0
    %v802 = vadd.f32 %v621, %v801
    %v803 = vpop.f32.mrb[0].mxu0
    %804 = vmatprep.mubr.bf16.mxu0 0
    %805 = vmatmul.mubr.bf16.gmra.mrb[0].mxu0 %v750
    %v806 = vpop.f32.mrb[0].mxu0
    %v807 = vadd.f32 %v626, %v806
    %v808 = vpop.f32.mrb[0].mxu0
    %v809 = vpop.f32.mrb[0].mxu0
    %v810 = vadd.f32 %v631, %v809
    %v811 = vpop.f32.mrb[0].mxu0
    %812 = vmatprep.mubr.bf16.mxu0 0
    %813 = vmatmul.mubr.bf16.gmra.mrb[0].mxu0 %v753
    %v814 = vpop.f32.mrb[0].mxu0
    %v815 = vadd.f32 %v636, %v814
    %v816 = vpop.f32.mrb[0].mxu0
    %v817 = vpop.f32.mrb[0].mxu0
    %v818 = vadd.f32 %v641, %v817
    %v819 = vpop.f32.mrb[0].mxu0
    %820 = vmatprep.mubr.bf16.mxu0 0
    %821 = vmatmul.mubr.bf16.gmra.mrb[0].mxu0 %v756
    %v822 = vpop.f32.mrb[0].mxu0
    %v823 = vadd.f32 %v646, %v822
    %v824 = vpop.f32.mrb[0].mxu0
    %v825 = vpop.f32.mrb[0].mxu0
    %v826 = vadd.f32 %v651, %v825
    %v827 = vpop.f32.mrb[0].mxu0
    %828 = vmatprep.mubr.bf16.mxu0 0
    %829 = vmatmul.mubr.bf16.gmra.mrb[0].mxu0 %v759
    %v830 = vpop.f32.mrb[0].mxu0
    %v831 = vadd.f32 %v656, %v830
    %v832 = vpop.f32.mrb[0].mxu0
    %v833 = vpop.f32.mrb[0].mxu0
    %v834 = vadd.f32 %v661, %v833
    %v835 = vpop.f32.mrb[0].mxu0
    %836 = vmatprep.mubr.bf16.mxu0 0
    %837 = vmatmul.mubr.bf16.gmra.mrb[0].mxu0 %v762
    %v838 = vpop.f32.mrb[0].mxu0
    %v839 = vadd.f32 %v666, %v838
    %v840 = vpop.f32.mrb[0].mxu0
    %v841 = vpop.f32.mrb[0].mxu0
    %v842 = vadd.f32 %v671, %v841
    %v843 = vpop.f32.mrb[0].mxu0
    %844 = vdwg.mxu0
    %vm845 = vcmp.gt.f32.partialorder %v799, 0.0
    %vm846 = vcmp.gt.f32.partialorder %v802, 0.0
    %vm847 = vcmp.gt.f32.partialorder %v807, 0.0
    %vm848 = vcmp.gt.f32.partialorder %v810, 0.0
    %vm849 = vcmp.gt.f32.partialorder %v815, 0.0
    %vm850 = vcmp.gt.f32.partialorder %v818, 0.0
    %vm851 = vcmp.gt.f32.partialorder %v823, 0.0
    %vm852 = vcmp.gt.f32.partialorder %v826, 0.0
    %vm853 = vcmp.gt.f32.partialorder %v831, 0.0
    %vm854 = vcmp.gt.f32.partialorder %v834, 0.0
    %vm855 = vcmp.gt.f32.partialorder %v839, 0.0
    %vm856 = vcmp.gt.f32.partialorder %v842, 0.0
    %v857 = vmul.f32 %v799, 0.01
    %v858 = vmul.f32 %v802, 0.01
    %v859 = vmul.f32 %v807, 0.01
    %v860 = vmul.f32 %v810, 0.01
    %v861 = vmul.f32 %v815, 0.01
    %v862 = vmul.f32 %v818, 0.01
    %v863 = vmul.f32 %v823, 0.01
    %v864 = vmul.f32 %v826, 0.01
    %v865 = vmul.f32 %v831, 0.01
    %v866 = vmul.f32 %v834, 0.01
    %v867 = vmul.f32 %v839, 0.01
    %v868 = vmul.f32 %v842, 0.01
    %v869 = vsel %vm845, %v799, %v857
    %v870 = vsel %vm846, %v802, %v858
    %v871 = vsel %vm847, %v807, %v859
    %v872 = vsel %vm848, %v810, %v860
    %v873 = vsel %vm849, %v815, %v861
    %v874 = vsel %vm850, %v818, %v862
    %v875 = vsel %vm851, %v823, %v863
    %v876 = vsel %vm852, %v826, %v864
    %v877 = vsel %vm853, %v831, %v865
    %v878 = vsel %vm854, %v834, %v866
    %v879 = vsel %vm855, %v839, %v867
    %v880 = vsel %vm856, %v842, %v868
    %v881 = vadd.f32 %v869, %v873
    %v882 = vadd.f32 %v870, %v874
    %v883 = vadd.f32 %v871, %v875
    %v884 = vadd.f32 %v872, %v876
    %v885 = vadd.f32 %v881, %v877
    %v886 = vadd.f32 %v882, %v878
    %v887 = vadd.f32 %v883, %v879
    %v888 = vadd.f32 %v884, %v880
    %v889 = vpack.c.bf16 %v886, %v885
    %v890 = vpack.c.bf16 %v888, %v887
    %v893 = vunpack.c.l.b16 %v889
    %v894 = vunpack.c.h.b16 %v889
    %v895 = vunpack.c.l.b16 %v890
    %v896 = vunpack.c.h.b16 %v890
    %v897 = vpack.c.b16 %v893, %v893
    %v898 = vpack.c.b16 %v894, %v894
    %v899 = vpack.c.b16 %v895, %v895
    %v900 = vpack.c.b16 %v896, %v896
    %905 = vst [vmem:[%s6] sm:$0xf] %v897
    %906 = vst [vmem:[%s6 + $0x4] sm:$0xf] %v898
    %907 = vst [vmem:[%s6 + $0x8] sm:$0xf] %v899
    %908 = vst [vmem:[%s6 + $0xc] sm:$0xf] %v900
    // Predicated region
    $region22: #{pconv_forward.2} parent=1 // pred_check
      _
    $region23: #{pconv_forward.2} parent=1 // pred_check_branch
      %910 = sbr.rel (0) target = $region25
    $region24: #{pconv_forward.2} parent=1 // pred_region
      _
    $region25: #{pconv_forward.2} parent=1 // pred_fallthru
      _
    // Predicated region
    $region26: #{pconv_forward.2} parent=1 // pred_check
      _
    $region27: #{pconv_forward.2} parent=1 // pred_check_branch
      %912 = sbr.rel (0) target = $region29
    $region28: #{pconv_forward.2} parent=1 // pred_region
      _
    $region29: #{pconv_forward.2} parent=1 // pred_fallthru
      _

</llo_original>
